<compile_context>
chip_gen: v6e
topology: v6e:2x2x1
jax: 0.10.0
libtpu: 0.0.40
codegen_flags: <defaults>
</compile_context>

<pallas_src>
import jax
import jax.numpy as jnp
import numpy as np
from jax.experimental import pallas as pl
from jax.experimental.pallas import tpu as pltpu

FEAT_PAD = 8      # feature (sublane) padding: 5 -> 8
LANE = 128        # batch (lane) tile granularity
MAX_BLK = 512     # max batch lanes per grid step


def _ae_kernel(x_ref, w1_ref, b1_ref, w23_ref, b23_ref, w4_ref, b4_ref, o_ref):
    # x_ref: (8, BLK) block of the transposed input; rows 0..4 are real
    # features, rows 5..7 are zero.  Padded weight rows/cols and bias rows are
    # zero, and ReLU(0) = 0, so padded feature rows stay exactly zero.
    x = x_ref[...]

    # encoder layer 1 + ReLU
    h = jnp.dot(w1_ref[...], x, preferred_element_type=jnp.float32) + b1_ref[...]
    h = jnp.maximum(h, 0.0)

    # folded (enc Linear(3,2) o dec Linear(2,3)) -- no ReLU in between -- + ReLU
    d = jnp.dot(w23_ref[...], h, preferred_element_type=jnp.float32) + b23_ref[...]
    d = jnp.maximum(d, 0.0)

    # decoder layer 2
    y = jnp.dot(w4_ref[...], d, preferred_element_type=jnp.float32) + b4_ref[...]

    o_ref[...] = y.astype(o_ref.dtype)


def _ceil_to(n, m):
    return ((n + m - 1) // m) * m


def _pad_w(w):
    """(out, in) PyTorch-style weight -> (8, 8) zero-padded."""
    out = jnp.zeros((FEAT_PAD, FEAT_PAD), jnp.float32)
    return out.at[: w.shape[0], : w.shape[1]].set(w)


def _pad_b(b):
    """(out,) bias -> (8, 1) zero-padded column (broadcasts along lanes)."""
    out = jnp.zeros((FEAT_PAD, 1), jnp.float32)
    return out.at[: b.shape[0], 0].set(b)


def init_params(key):
    """Deterministic init mimicking nn.Linear default (uniform +-1/sqrt(fan_in)).
    Weights stored PyTorch-style as (out, in)."""
    shapes = [(3, 5), (2, 3), (3, 2), (5, 3)]  # enc1, enc2, dec1, dec2
    params = []
    for (out_f, in_f) in shapes:
        kw, kb, key = jax.random.split(key, 3)
        bound = 1.0 / np.sqrt(in_f)
        w = jax.random.uniform(kw, (out_f, in_f), jnp.float32, -bound, bound)
        b = jax.random.uniform(kb, (out_f,), jnp.float32, -bound, bound)
        params.append((w, b))
    return params


def autoencoder_forward(x, params):
    """x: (B, 5) float32. Returns (B, 5) float32."""
    B, F_in = x.shape
    assert F_in == 5

    (w1, b1), (w2, b2), (w3, b3), (w4, b4) = params

    # Fold the two middle linears (no ReLU between them): one (3,3) layer.
    w23 = w3 @ w2              # (3, 3)
    b23 = w3 @ b2 + b3         # (3,)

    # Transposed compact layout: features on sublanes (5 -> 8), batch on lanes.
    blk = min(MAX_BLK, _ceil_to(B, LANE))
    bp = _ceil_to(B, blk)
    x_t = jnp.zeros((FEAT_PAD, bp), jnp.float32).at[:5, :B].set(x.T)

    w1p, b1p = _pad_w(w1), _pad_b(b1)
    w23p, b23p = _pad_w(w23), _pad_b(b23)
    w4p, b4p = _pad_w(w4), _pad_b(b4)

    grid = (bp // blk,)
    weight_spec = pl.BlockSpec((FEAT_PAD, FEAT_PAD), lambda i: (0, 0))
    bias_spec = pl.BlockSpec((FEAT_PAD, 1), lambda i: (0, 0))

    out_t = pl.pallas_call(
        _ae_kernel,
        out_shape=jax.ShapeDtypeStruct((FEAT_PAD, bp), jnp.float32),
        grid=grid,
        in_specs=[
            pl.BlockSpec((FEAT_PAD, blk), lambda i: (0, i)),   # x (transposed)
            weight_spec, bias_spec,                            # W1, b1
            weight_spec, bias_spec,                            # W23, b23
            weight_spec, bias_spec,                            # W4, b4
        ],
        out_specs=pl.BlockSpec((FEAT_PAD, blk), lambda i: (0, i)),
        compiler_params=pltpu.CompilerParams(
            dimension_semantics=("parallel",)),
    )(x_t, w1p, b1p, w23p, b23p, w4p, b4p)

    # Drop feature padding and batch padding; back to (B, 5).
    return out_t[:5, :B].T


def _reference_forward(x, params):
    (w1, b1), (w2, b2), (w3, b3), (w4, b4) = params
    h = jnp.maximum(x @ w1.T + b1, 0.0)
    z = h @ w2.T + b2
    d = jnp.maximum(z @ w3.T + b3, 0.0)
    return d @ w4.T + b4


if __name__ == "__main__":
    key = jax.random.PRNGKey(0)
    k_x, k_x2, k_p = jax.random.split(key, 3)
    params = init_params(k_p)

    # Small case (single grid step).
    x = jax.random.normal(k_x, (2, 5), dtype=jnp.float32)
    y = jax.block_until_ready(autoencoder_forward(x, params))
    y_ref = _reference_forward(x, params)
    np.testing.assert_allclose(np.asarray(y), np.asarray(y_ref),
                               rtol=1e-5, atol=1e-5)

    # Larger case exercising multiple grid steps + ragged batch tail.
    x2 = jax.random.normal(k_x2, (777, 5), dtype=jnp.float32)
    y2 = jax.block_until_ready(autoencoder_forward(x2, params))
    y2_ref = _reference_forward(x2, params)
    np.testing.assert_allclose(np.asarray(y2), np.asarray(y2_ref),
                               rtol=1e-5, atol=1e-5)

    print("KERNEL_OK")
</pallas_src>

<mosaic_0001>
module attributes {stable_mosaic.version = 11 : i64} {
  func.func @_ae_kernel(%arg0: i32, %arg1: memref<8x128xf32, #tpu.memory_space<vmem>>, %arg2: memref<8x8xf32, #tpu.memory_space<vmem>>, %arg3: memref<8x1xf32, #tpu.memory_space<vmem>>, %arg4: memref<8x8xf32, #tpu.memory_space<vmem>>, %arg5: memref<8x1xf32, #tpu.memory_space<vmem>>, %arg6: memref<8x8xf32, #tpu.memory_space<vmem>>, %arg7: memref<8x1xf32, #tpu.memory_space<vmem>>, %arg8: memref<8x128xf32, #tpu.memory_space<vmem>>) attributes {dimension_semantics = [#tpu.dimension_semantics<parallel>], iteration_bounds = array<i64: 1>, scalar_prefetch = 0 : i64, scratch_operands = 0 : i64, tpu.core_type = #tpu.core_type<tc>, window_params = [{transform_indices = @transform_0, window_bounds = array<i64: 8, 128>}, {pipeline_mode = #tpu.pipeline_mode<synchronous>, transform_indices = @transform_1, window_bounds = array<i64: 8, 8>}, {pipeline_mode = #tpu.pipeline_mode<synchronous>, transform_indices = @transform_2, window_bounds = array<i64: 8, 1>}, {pipeline_mode = #tpu.pipeline_mode<synchronous>, transform_indices = @transform_3, window_bounds = array<i64: 8, 8>}, {pipeline_mode = #tpu.pipeline_mode<synchronous>, transform_indices = @transform_4, window_bounds = array<i64: 8, 1>}, {pipeline_mode = #tpu.pipeline_mode<synchronous>, transform_indices = @transform_5, window_bounds = array<i64: 8, 8>}, {pipeline_mode = #tpu.pipeline_mode<synchronous>, transform_indices = @transform_6, window_bounds = array<i64: 8, 1>}, {transform_indices = @transform_7, window_bounds = array<i64: 8, 128>}]} {
    %c0 = arith.constant 0 : index
    %c0_0 = arith.constant 0 : index
    %0 = vector.load %arg1[%c0, %c0_0] : memref<8x128xf32, #tpu.memory_space<vmem>>, vector<8x128xf32>
    %c0_1 = arith.constant 0 : index
    %c0_2 = arith.constant 0 : index
    %1 = vector.load %arg2[%c0_1, %c0_2] : memref<8x8xf32, #tpu.memory_space<vmem>>, vector<8x8xf32>
    %cst = arith.constant dense<0.000000e+00> : vector<8x128xf32>
    %2 = tpu.matmul %1, %0, %cst {dimension_numbers = #tpu.dot_dimension_numbers<[1], [0], [0], [1], [0, 0, 1, 1], [], []>} : vector<8x8xf32>, vector<8x128xf32>, vector<8x128xf32> -> vector<8x128xf32>
    %c0_3 = arith.constant 0 : index
    %c0_4 = arith.constant 0 : index
    %3 = vector.load %arg3[%c0_3, %c0_4] : memref<8x1xf32, #tpu.memory_space<vmem>>, vector<8x1xf32>
    %4 = vector.broadcast %3 : vector<8x1xf32> to vector<8x128xf32>
    %5 = arith.addf %2, %4 : vector<8x128xf32>
    %cst_5 = arith.constant 0.000000e+00 : f32
    %6 = vector.broadcast %cst_5 : f32 to vector<8x128xf32>
    %7 = arith.maximumf %5, %6 : vector<8x128xf32>
    %c0_6 = arith.constant 0 : index
    %c0_7 = arith.constant 0 : index
    %8 = vector.load %arg4[%c0_6, %c0_7] : memref<8x8xf32, #tpu.memory_space<vmem>>, vector<8x8xf32>
    %cst_8 = arith.constant dense<0.000000e+00> : vector<8x128xf32>
    %9 = tpu.matmul %8, %7, %cst_8 {dimension_numbers = #tpu.dot_dimension_numbers<[1], [0], [0], [1], [0, 0, 1, 1], [], []>} : vector<8x8xf32>, vector<8x128xf32>, vector<8x128xf32> -> vector<8x128xf32>
    %c0_9 = arith.constant 0 : index
    %c0_10 = arith.constant 0 : index
    %10 = vector.load %arg5[%c0_9, %c0_10] : memref<8x1xf32, #tpu.memory_space<vmem>>, vector<8x1xf32>
    %11 = vector.broadcast %10 : vector<8x1xf32> to vector<8x128xf32>
    %12 = arith.addf %9, %11 : vector<8x128xf32>
    %cst_11 = arith.constant 0.000000e+00 : f32
    %13 = vector.broadcast %cst_11 : f32 to vector<8x128xf32>
    %14 = arith.maximumf %12, %13 : vector<8x128xf32>
    %c0_12 = arith.constant 0 : index
    %c0_13 = arith.constant 0 : index
    %15 = vector.load %arg6[%c0_12, %c0_13] : memref<8x8xf32, #tpu.memory_space<vmem>>, vector<8x8xf32>
    %cst_14 = arith.constant dense<0.000000e+00> : vector<8x128xf32>
    %16 = tpu.matmul %15, %14, %cst_14 {dimension_numbers = #tpu.dot_dimension_numbers<[1], [0], [0], [1], [0, 0, 1, 1], [], []>} : vector<8x8xf32>, vector<8x128xf32>, vector<8x128xf32> -> vector<8x128xf32>
    %c0_15 = arith.constant 0 : index
    %c0_16 = arith.constant 0 : index
    %17 = vector.load %arg7[%c0_15, %c0_16] : memref<8x1xf32, #tpu.memory_space<vmem>>, vector<8x1xf32>
    %18 = vector.broadcast %17 : vector<8x1xf32> to vector<8x128xf32>
    %19 = arith.addf %16, %18 : vector<8x128xf32>
    %c0_17 = arith.constant 0 : index
    %c0_18 = arith.constant 0 : index
    %20 = vector.load %arg8[%c0_17, %c0_18] : memref<8x128xf32, #tpu.memory_space<vmem>>, vector<8x128xf32>
    tpu.vector_store %arg8[%c0_17, %c0_18], %19 {strides = array<i32>} : memref<8x128xf32, #tpu.memory_space<vmem>>, vector<8x128xf32>,
    return
  }
  func.func @transform_0(%arg0: i32) -> (i32, i32) {
    %c0_i32 = arith.constant 0 : i32
    %c0_i32_0 = arith.constant 0 : i32
    return %c0_i32, %arg0 : i32, i32
  }
  func.func @transform_1(%arg0: i32) -> (i32, i32) {
    %c0_i32 = arith.constant 0 : i32
    %c0_i32_0 = arith.constant 0 : i32
    %c0_i32_1 = arith.constant 0 : i32
    return %c0_i32, %c0_i32_0 : i32, i32
  }
  func.func @transform_2(%arg0: i32) -> (i32, i32) {
    %c0_i32 = arith.constant 0 : i32
    %c0_i32_0 = arith.constant 0 : i32
    %c0_i32_1 = arith.constant 0 : i32
    return %c0_i32, %c0_i32_0 : i32, i32
  }
  func.func @transform_3(%arg0: i32) -> (i32, i32) {
    %c0_i32 = arith.constant 0 : i32
    %c0_i32_0 = arith.constant 0 : i32
    %c0_i32_1 = arith.constant 0 : i32
    return %c0_i32, %c0_i32_0 : i32, i32
  }
  func.func @transform_4(%arg0: i32) -> (i32, i32) {
    %c0_i32 = arith.constant 0 : i32
    %c0_i32_0 = arith.constant 0 : i32
    %c0_i32_1 = arith.constant 0 : i32
    return %c0_i32, %c0_i32_0 : i32, i32
  }
  func.func @transform_5(%arg0: i32) -> (i32, i32) {
    %c0_i32 = arith.constant 0 : i32
    %c0_i32_0 = arith.constant 0 : i32
    %c0_i32_1 = arith.constant 0 : i32
    return %c0_i32, %c0_i32_0 : i32, i32
  }
  func.func @transform_6(%arg0: i32) -> (i32, i32) {
    %c0_i32 = arith.constant 0 : i32
    %c0_i32_0 = arith.constant 0 : i32
    %c0_i32_1 = arith.constant 0 : i32
    return %c0_i32, %c0_i32_0 : i32, i32
  }
  func.func @transform_7(%arg0: i32) -> (i32, i32) {
    %c0_i32 = arith.constant 0 : i32
    %c0_i32_0 = arith.constant 0 : i32
    return %c0_i32, %arg0 : i32, i32
  }
}

</mosaic_0001>

<llo_original>
// kernel: tpu_custom_call.1
$region0: #{tpu_custom_call.1}
  #allocation0 [shape = 'u32[]', space=smem, size = 0x4, offset = 0x4, fixed_abs, tag = 'smem constant byte address 0x4 - core index']
  #allocation1 [shape = 'u32[144,128]{1,0:T(1,128)}', space=vmem, size = 0x12000, scoped, tag = 'internal scratch']
  %s0 = inlined_call_operand.vmem [shape: f32[8,128], index: 0, kind: input, shape index: {}]
  %s1 = inlined_call_operand.vmem [shape: f32[8,8], index: 1, kind: input, shape index: {}]
  %s2 = inlined_call_operand.vmem [shape: f32[8,1], index: 2, kind: input, shape index: {}]
  %s3 = inlined_call_operand.vmem [shape: f32[8,8], index: 3, kind: input, shape index: {}]
  %s4 = inlined_call_operand.vmem [shape: f32[8,1], index: 4, kind: input, shape index: {}]
  %s5 = inlined_call_operand.vmem [shape: f32[8,8], index: 5, kind: input, shape index: {}]
  %s6 = inlined_call_operand.vmem [shape: f32[8,1], index: 6, kind: input, shape index: {}]
  %s7 = inlined_call_operand.hbm [shape: f32[8,128], index: 7, kind: output, shape index: {}]
  %s8 = sld [smem:[#allocation0]]
  $region38: #{tpu_custom_call.1} parent=0
    _
  %s10 = ssub.s32 1, %s8
  %s11 = scalar_select 0, %s10, %s8
  $region1: #{tpu_custom_call.1} parent=0
    #allocation2 [shape = 'u8[4096]{0}', space=vmem, size = 0x1000, scoped, tag = 'output window, operand 0, single buffered']
    #allocation3 [shape = 's32[1]{0}', space=sflag, size = 0x4, scoped, tag = 'scoped memory for tpu_custom_call.1']
    %12 = vsyncpa [#allocation3], 0
    // Predicated region
    $region2: #{tpu_custom_call.1} parent=1 // pred_check
      _
    $region3: #{tpu_custom_call.1} parent=1 // pred_check_branch
      %14 = sbr.rel (0) target = $region5
    $region4: #{tpu_custom_call.1} parent=1 // pred_region
      _
    $region5: #{tpu_custom_call.1} parent=1 // pred_fallthru
      _
    // Predicated region
    $region6: #{tpu_custom_call.1} parent=1 // pred_check
      _
    $region7: #{tpu_custom_call.1} parent=1 // pred_check_branch
      %16 = sbr.rel (0) target = $region9
    $region8: #{tpu_custom_call.1} parent=1 // pred_region
      _
    $region9: #{tpu_custom_call.1} parent=1 // pred_fallthru
      _
    // Predicated region
    $region10: #{tpu_custom_call.1} parent=1 // pred_check
      _
    $region11: #{tpu_custom_call.1} parent=1 // pred_check_branch
      %18 = sbr.rel (0) target = $region13
    $region12: #{tpu_custom_call.1} parent=1 // pred_region
      _
    $region13: #{tpu_custom_call.1} parent=1 // pred_fallthru
      _
    // Predicated region
    $region14: #{tpu_custom_call.1} parent=1 // pred_check
      _
    $region15: #{tpu_custom_call.1} parent=1 // pred_check_branch
      %20 = sbr.rel (0) target = $region17
    $region16: #{tpu_custom_call.1} parent=1 // pred_region
      _
    $region17: #{tpu_custom_call.1} parent=1 // pred_fallthru
      _
    // Predicated region
    $region18: #{tpu_custom_call.1} parent=1 // pred_check
      _
    $region19: #{tpu_custom_call.1} parent=1 // pred_check_branch
      %22 = sbr.rel (0) target = $region21
    $region20: #{tpu_custom_call.1} parent=1 // pred_region
      _
    $region21: #{tpu_custom_call.1} parent=1 // pred_fallthru
      _
    // Predicated region
    $region22: #{tpu_custom_call.1} parent=1 // pred_check
      _
    $region23: #{tpu_custom_call.1} parent=1 // pred_check_branch
      %24 = sbr.rel (0) target = $region25
    $region24: #{tpu_custom_call.1} parent=1 // pred_region
      _
    $region25: #{tpu_custom_call.1} parent=1 // pred_fallthru
      _
    // Predicated region
    $region26: #{tpu_custom_call.1} parent=1 // pred_check
      _
    $region27: #{tpu_custom_call.1} parent=1 // pred_check_branch
      %26 = sbr.rel (0) target = $region29
    $region28: #{tpu_custom_call.1} parent=1 // pred_region
      _
    $region29: #{tpu_custom_call.1} parent=1 // pred_fallthru
      _
    %v27 = vld [vmem:[%s0] sm:$0xff]
    %v28 = vld [vmem:[%s1] sm:$0xff]
    %v29 = vld [vmem:[%s2] sm:$0xff]
    %31 = vset.pattern.permute.xlu0 0
    %32 = vperm.xlu0 %31, %v29
    %v33 = vpop.permute.xlu0 %32
    %vm35 = vcmask 64512
    %v37 = vsel %vm35, %v28, 0
    %39 = vmatprep.subr.mxu0 0.0
    %40 = vmatpush1.msra.mxu0 0.0
    %41 = vmatprep.subr.mxu0 0.0
    %42 = vmatpush1.msra.mxu0 0.0
    %43 = vmatprep.subr.mxu0 0.0
    %44 = vmatpush1.msra.mxu0 0.0
    %45 = vmatprep.subr.mxu0 0.0
    %46 = vmatpush1.msra.mxu0 0.0
    %47 = vmatprep.subr.mxu0 0.0
    %48 = vmatpush1.msra.mxu0 0.0
    %49 = vmatprep.subr.mxu0 0.0
    %50 = vmatpush1.msra.mxu0 0.0
    %51 = vmatprep.subr.mxu0 0.0
    %52 = vmatpush1.msra.mxu0 0.0
    %53 = vmatprep.subr.mxu0 0.0
    %54 = vmatpush1.msra.mxu0 0.0
    %55 = vmatprep.subr.mxu0 0.0
    %56 = vmatpush1.msra.mxu0 0.0
    %57 = vmatprep.subr.mxu0 0.0
    %58 = vmatpush1.msra.mxu0 0.0
    %59 = vmatprep.subr.mxu0 0.0
    %60 = vmatpush1.msra.mxu0 0.0
    %61 = vmatprep.subr.mxu0 0.0
    %62 = vmatpush1.msra.mxu0 0.0
    %63 = vmatprep.subr.mxu0 0.0
    %64 = vmatpush1.msra.mxu0 0.0
    %65 = vmatprep.subr.mxu0 0.0
    %66 = vmatpush1.msra.mxu0 0.0
    %67 = vmatprep.subr.mxu0 0.0
    %68 = vmatpush1.msra.mxu0 0.0
    %69 = vmatprep.subr.mxu0 0.0
    %70 = vmatpush1.msra.mxu0 %v27
    %71 = vmatprep.subr.mxu0 0.0
    %72 = vmatpush2.msra.mxu0 0.0
    %73 = vmatprep.subr.mxu0 0.0
    %74 = vmatpush2.msra.mxu0 0.0
    %75 = vmatprep.subr.mxu0 0.0
    %76 = vmatpush2.msra.mxu0 0.0
    %77 = vmatprep.subr.mxu0 0.0
    %78 = vmatpush2.msra.mxu0 0.0
    %79 = vmatprep.subr.mxu0 0.0
    %80 = vmatpush2.msra.mxu0 0.0
    %81 = vmatprep.subr.mxu0 0.0
    %82 = vmatpush2.msra.mxu0 0.0
    %83 = vmatprep.subr.mxu0 0.0
    %84 = vmatpush2.msra.mxu0 0.0
    %85 = vmatprep.subr.mxu0 0.0
    %86 = vmatpush2.msra.mxu0 0.0
    %87 = vmatprep.subr.mxu0 0.0
    %88 = vmatpush2.msra.mxu0 0.0
    %89 = vmatprep.subr.mxu0 0.0
    %90 = vmatpush2.msra.mxu0 0.0
    %91 = vmatprep.subr.mxu0 0.0
    %92 = vmatpush2.msra.mxu0 0.0
    %93 = vmatprep.subr.mxu0 0.0
    %94 = vmatpush2.msra.mxu0 0.0
    %95 = vmatprep.subr.mxu0 0.0
    %96 = vmatpush2.msra.mxu0 0.0
    %97 = vmatprep.subr.mxu0 0.0
    %98 = vmatpush2.msra.mxu0 0.0
    %99 = vmatprep.subr.mxu0 0.0
    %100 = vmatpush2.msra.mxu0 0.0
    %101 = vmatprep.subr.mxu0 0.0
    %102 = vmatpush2.msra.mxu0 0.0
    %103 = vmatprep.mubr.f32.mxu0 0.0
    %104 = vmatmul.mubr.f32.gmra.mxu0 %v37
    %v105 = vpop.f32.mrf.mxu0
    %v106 = vadd.f32 %v33, %v105
    %v107 = vpop.f32.mrf.mxu0
    %108 = vdwg.mxu0
    %v109 = vmax.f32 %v106, 0.0
    %v110 = vld [vmem:[%s3] sm:$0xff]
    %v111 = vld [vmem:[%s4] sm:$0xff]
    %113 = vset.pattern.permute.xlu0 0
    %114 = vperm.xlu0 %113, %v111
    %v115 = vpop.permute.xlu0 %114
    %v118 = vsel %vm35, %v110, 0
    %120 = vmatprep.subr.mxu0 0.0
    %121 = vmatpush1.msra.mxu0 0.0
    %122 = vmatprep.subr.mxu0 0.0
    %123 = vmatpush1.msra.mxu0 0.0
    %124 = vmatprep.subr.mxu0 0.0
    %125 = vmatpush1.msra.mxu0 0.0
    %126 = vmatprep.subr.mxu0 0.0
    %127 = vmatpush1.msra.mxu0 0.0
    %128 = vmatprep.subr.mxu0 0.0
    %129 = vmatpush1.msra.mxu0 0.0
    %130 = vmatprep.subr.mxu0 0.0
    %131 = vmatpush1.msra.mxu0 0.0
    %132 = vmatprep.subr.mxu0 0.0
    %133 = vmatpush1.msra.mxu0 0.0
    %134 = vmatprep.subr.mxu0 0.0
    %135 = vmatpush1.msra.mxu0 0.0
    %136 = vmatprep.subr.mxu0 0.0
    %137 = vmatpush1.msra.mxu0 0.0
    %138 = vmatprep.subr.mxu0 0.0
    %139 = vmatpush1.msra.mxu0 0.0
    %140 = vmatprep.subr.mxu0 0.0
    %141 = vmatpush1.msra.mxu0 0.0
    %142 = vmatprep.subr.mxu0 0.0
    %143 = vmatpush1.msra.mxu0 0.0
    %144 = vmatprep.subr.mxu0 0.0
    %145 = vmatpush1.msra.mxu0 0.0
    %146 = vmatprep.subr.mxu0 0.0
    %147 = vmatpush1.msra.mxu0 0.0
    %148 = vmatprep.subr.mxu0 0.0
    %149 = vmatpush1.msra.mxu0 0.0
    %150 = vmatprep.subr.mxu0 0.0
    %151 = vmatpush1.msra.mxu0 %v109
    %152 = vmatprep.subr.mxu0 0.0
    %153 = vmatpush2.msra.mxu0 0.0
    %154 = vmatprep.subr.mxu0 0.0
    %155 = vmatpush2.msra.mxu0 0.0
    %156 = vmatprep.subr.mxu0 0.0
    %157 = vmatpush2.msra.mxu0 0.0
    %158 = vmatprep.subr.mxu0 0.0
    %159 = vmatpush2.msra.mxu0 0.0
    %160 = vmatprep.subr.mxu0 0.0
    %161 = vmatpush2.msra.mxu0 0.0
    %162 = vmatprep.subr.mxu0 0.0
    %163 = vmatpush2.msra.mxu0 0.0
    %164 = vmatprep.subr.mxu0 0.0
    %165 = vmatpush2.msra.mxu0 0.0
    %166 = vmatprep.subr.mxu0 0.0
    %167 = vmatpush2.msra.mxu0 0.0
    %168 = vmatprep.subr.mxu0 0.0
    %169 = vmatpush2.msra.mxu0 0.0
    %170 = vmatprep.subr.mxu0 0.0
    %171 = vmatpush2.msra.mxu0 0.0
    %172 = vmatprep.subr.mxu0 0.0
    %173 = vmatpush2.msra.mxu0 0.0
    %174 = vmatprep.subr.mxu0 0.0
    %175 = vmatpush2.msra.mxu0 0.0
    %176 = vmatprep.subr.mxu0 0.0
    %177 = vmatpush2.msra.mxu0 0.0
    %178 = vmatprep.subr.mxu0 0.0
    %179 = vmatpush2.msra.mxu0 0.0
    %180 = vmatprep.subr.mxu0 0.0
    %181 = vmatpush2.msra.mxu0 0.0
    %182 = vmatprep.subr.mxu0 0.0
    %183 = vmatpush2.msra.mxu0 0.0
    %184 = vmatprep.mubr.f32.mxu0 0.0
    %185 = vmatmul.mubr.f32.gmra.mxu0 %v118
    %v186 = vpop.f32.mrf.mxu0
    %v187 = vadd.f32 %v115, %v186
    %v188 = vpop.f32.mrf.mxu0
    %189 = vdwg.mxu0
    %v190 = vmax.f32 %v187, 0.0
    %v191 = vld [vmem:[%s5] sm:$0xff]
    %v192 = vld [vmem:[%s6] sm:$0xff]
    %194 = vset.pattern.permute.xlu0 0
    %195 = vperm.xlu0 %194, %v192
    %v196 = vpop.permute.xlu0 %195
    %v199 = vsel %vm35, %v191, 0
    %201 = vmatprep.subr.mxu0 0.0
    %202 = vmatpush1.msra.mxu0 0.0
    %203 = vmatprep.subr.mxu0 0.0
    %204 = vmatpush1.msra.mxu0 0.0
    %205 = vmatprep.subr.mxu0 0.0
    %206 = vmatpush1.msra.mxu0 0.0
    %207 = vmatprep.subr.mxu0 0.0
    %208 = vmatpush1.msra.mxu0 0.0
    %209 = vmatprep.subr.mxu0 0.0
    %210 = vmatpush1.msra.mxu0 0.0
    %211 = vmatprep.subr.mxu0 0.0
    %212 = vmatpush1.msra.mxu0 0.0
    %213 = vmatprep.subr.mxu0 0.0
    %214 = vmatpush1.msra.mxu0 0.0
    %215 = vmatprep.subr.mxu0 0.0
    %216 = vmatpush1.msra.mxu0 0.0
    %217 = vmatprep.subr.mxu0 0.0
    %218 = vmatpush1.msra.mxu0 0.0
    %219 = vmatprep.subr.mxu0 0.0
    %220 = vmatpush1.msra.mxu0 0.0
    %221 = vmatprep.subr.mxu0 0.0
    %222 = vmatpush1.msra.mxu0 0.0
    %223 = vmatprep.subr.mxu0 0.0
    %224 = vmatpush1.msra.mxu0 0.0
    %225 = vmatprep.subr.mxu0 0.0
    %226 = vmatpush1.msra.mxu0 0.0
    %227 = vmatprep.subr.mxu0 0.0
    %228 = vmatpush1.msra.mxu0 0.0
    %229 = vmatprep.subr.mxu0 0.0
    %230 = vmatpush1.msra.mxu0 0.0
    %231 = vmatprep.subr.mxu0 0.0
    %232 = vmatpush1.msra.mxu0 %v190
    %233 = vmatprep.subr.mxu0 0.0
    %234 = vmatpush2.msra.mxu0 0.0
    %235 = vmatprep.subr.mxu0 0.0
    %236 = vmatpush2.msra.mxu0 0.0
    %237 = vmatprep.subr.mxu0 0.0
    %238 = vmatpush2.msra.mxu0 0.0
    %239 = vmatprep.subr.mxu0 0.0
    %240 = vmatpush2.msra.mxu0 0.0
    %241 = vmatprep.subr.mxu0 0.0
    %242 = vmatpush2.msra.mxu0 0.0
    %243 = vmatprep.subr.mxu0 0.0
    %244 = vmatpush2.msra.mxu0 0.0
    %245 = vmatprep.subr.mxu0 0.0
    %246 = vmatpush2.msra.mxu0 0.0
    %247 = vmatprep.subr.mxu0 0.0
    %248 = vmatpush2.msra.mxu0 0.0
    %249 = vmatprep.subr.mxu0 0.0
    %250 = vmatpush2.msra.mxu0 0.0
    %251 = vmatprep.subr.mxu0 0.0
    %252 = vmatpush2.msra.mxu0 0.0
    %253 = vmatprep.subr.mxu0 0.0
    %254 = vmatpush2.msra.mxu0 0.0
    %255 = vmatprep.subr.mxu0 0.0
    %256 = vmatpush2.msra.mxu0 0.0
    %257 = vmatprep.subr.mxu0 0.0
    %258 = vmatpush2.msra.mxu0 0.0
    %259 = vmatprep.subr.mxu0 0.0
    %260 = vmatpush2.msra.mxu0 0.0
    %261 = vmatprep.subr.mxu0 0.0
    %262 = vmatpush2.msra.mxu0 0.0
    %263 = vmatprep.subr.mxu0 0.0
    %264 = vmatpush2.msra.mxu0 0.0
    %265 = vmatprep.mubr.f32.mxu0 0.0
    %266 = vmatmul.mubr.f32.gmra.mxu0 %v199
    %v267 = vpop.f32.mrf.mxu0
    %v268 = vadd.f32 %v196, %v267
    %v269 = vpop.f32.mrf.mxu0
    %270 = vdwg.mxu0
    %271 = vst [vmem:[#allocation2] sm:$0xff] %v268
    // Predicated region
    $region30: #{tpu_custom_call.1} parent=1 // pred_check
      _
    $region31: #{tpu_custom_call.1} parent=1 // pred_check_branch
      %273 = sbr.rel (0) target = $region33
    $region32: #{tpu_custom_call.1} parent=1 // pred_region
      %s275 = ssub.s32 128, 128
      %276 = vsyncadd [#allocation3], %s275
      %s278 = sshll.u32 [#allocation2], 4
      %s279 = int_to_ptr.vmem [resolvable:$true] %s278
      %281 = dma.vmem_to_hbm [thread:$0]  %s279, 128, %s7, [#allocation3]
    $region33: #{tpu_custom_call.1} parent=1 // pred_fallthru
      _
    // Predicated region
    $region34: #{tpu_custom_call.1} parent=1 // pred_check
      _
    $region35: #{tpu_custom_call.1} parent=1 // pred_check_branch
      %283 = sbr.rel (0) target = $region37
    $region36: #{tpu_custom_call.1} parent=1 // pred_region
      %284 = dma.done [#allocation3], 128
    $region37: #{tpu_custom_call.1} parent=1 // pred_fallthru
      _
    %285 = vsyncpa [#allocation3], 1

</llo_original>
